<compile_context>
chip_gen: v5e
topology: v5e:2x2
jax: 0.10.0
libtpu: 0.0.40
codegen_flags: <defaults>
</compile_context>

<pallas_src>
import functools

import jax
import jax.numpy as jnp
from jax.experimental import pallas as pl
from jax.experimental.pallas import tpu as pltpu


def _pair(k):
    if isinstance(k, (tuple, list)):
        return tuple(k)
    return (k, k)


def _avg_pool_kernel(x_ref, pw_ref, o_ref, *, kh, out_rows):
    # x_ref : (TN*H, W)   TN stacked images, native dtype
    # pw_ref: (W, Wo)     right pooling matrix, weights already 1/(kh*kw)
    # o_ref : (TN*Ho, Wo)
    #
    # Row (kh) pool: kh strided sublane reads summed on the VPU in f32.
    acc = x_ref[pl.ds(0, out_rows, stride=kh), :].astype(jnp.float32)
    for r in range(1, kh):  # static, small, unrolled
        acc = acc + x_ref[pl.ds(r, out_rows, stride=kh), :].astype(jnp.float32)
    # Column (kw) pool: one batched MXU matmul, M = TN*Ho, K = W, N = Wo.
    o_ref[...] = jnp.dot(
        acc, pw_ref[...], preferred_element_type=jnp.float32
    ).astype(o_ref.dtype)


def _choose_block_images(N, H, W, Ho, Wo, itemsize, budget_bytes=10 << 20):
    """Largest divisor TN of N whose (double-buffered) VMEM footprint fits."""
    # double-buffered input + output blocks + f32 intermediates (conservative)
    per_image = H * W * (2 * itemsize + 4) + Ho * Wo * (2 * itemsize + 4)
    max_tn = max(1, int(budget_bytes // max(per_image, 1)))
    best = 1
    for tn in range(1, N + 1):
        if N % tn == 0 and tn <= max_tn:
            best = tn
    return best


def avg_pool_cmplx(x, kernel_size):
    """Complex average pooling (AvgPoolCmplx.forward).

    x: (2, B, C, H, W) float array; dim 0 holds (real, imag), rest is NCHW.
    Returns (2, B, C, H//kh, W//kw)  (floor mode, like torch's avg_pool2d).
    """
    kh, kw = _pair(kernel_size)
    two, B, C, H, W = x.shape
    if two != 2:
        raise ValueError("complex tensor must have leading dim of size 2")
    Ho, Wo = H // kh, W // kw
    if Ho == 0 or Wo == 0:
        raise ValueError("pooling kernel larger than spatial dims")

    # torch floor-mode: drop trailing rows/cols that don't fill a window.
    Hc, Wc = Ho * kh, Wo * kw
    if (Hc, Wc) != (H, W):
        x = x[..., :Hc, :Wc]

    N = 2 * B * C
    itemsize = jnp.dtype(x.dtype).itemsize
    TN = _choose_block_images(N, Hc, Wc, Ho, Wo, itemsize)
    steps = N // TN

    # Metadata-only reshape, native dtype (no f32 copy in HBM).
    xb = x.reshape(steps, TN * Hc, Wc)

    # Right pooling matrix: pw[w, wo] = 1/(kh*kw) if w // kw == wo else 0.
    inv = 1.0 / float(kh * kw)
    pw = (
        jax.lax.broadcasted_iota(jnp.int32, (Wc, Wo), 0) // kw
        == jax.lax.broadcasted_iota(jnp.int32, (Wc, Wo), 1)
    ).astype(jnp.float32) * jnp.float32(inv)

    kernel = functools.partial(_avg_pool_kernel, kh=kh, out_rows=TN * Ho)

    flops = 2 * N * Ho * Wc * Wo + (kh - 1) * N * Ho * Wc
    bytes_accessed = (
        N * Hc * Wc * itemsize + N * Ho * Wo * itemsize + Wc * Wo * 4
    )

    out = pl.pallas_call(
        kernel,
        out_shape=jax.ShapeDtypeStruct((steps, TN * Ho, Wo), x.dtype),
        grid=(steps,),
        in_specs=[
            # None => squeezed leading dim; last two dims equal the full array
            # dims, so no (8,128) divisibility constraints on odd shapes.
            pl.BlockSpec((None, TN * Hc, Wc), lambda n: (n, 0, 0)),
            pl.BlockSpec((Wc, Wo), lambda n: (0, 0)),
        ],
        out_specs=pl.BlockSpec((None, TN * Ho, Wo), lambda n: (n, 0, 0)),
        compiler_params=pltpu.CompilerParams(
            dimension_semantics=("parallel",)
        ),
        cost_estimate=pl.CostEstimate(
            flops=flops, transcendentals=0, bytes_accessed=bytes_accessed
        ),
    )(xb, pw)

    # Metadata-only reshape back to the complex NCHW layout.
    return out.reshape(2, B, C, Ho, Wo)


class AvgPoolCmplx:
    """JAX/Pallas port of igcn.cmplx_modules.AvgPoolCmplx (no learnable params)."""

    _DEFAULTS = {
        "stride": None,
        "padding": 0,
        "ceil_mode": False,
        "count_include_pad": True,
    }

    def __init__(self, kernel_size, **pool_kwargs):
        self.kernel_size = _pair(kernel_size)
        for k, v in pool_kwargs.items():
            ok = (
                k in self._DEFAULTS
                and (
                    v == self._DEFAULTS[k]
                    or (k == "stride" and _pair(v) == self.kernel_size)
                )
            )
            if not ok:
                raise NotImplementedError(
                    f"AvgPoolCmplx Pallas port only supports default pooling "
                    f"options; got {k}={v!r}"
                )
        self.pool_kwargs = pool_kwargs

    def __call__(self, x):
        return avg_pool_cmplx(x, self.kernel_size)


if __name__ == "__main__":
    key = jax.random.PRNGKey(0)
    B, C, H, W = 2, 4, 16, 16
    kernel_size = 2

    # complex tensor: (2, B, C, H, W), dim 0 = (real, imag)
    x = jax.random.normal(key, (2, B, C, H, W), dtype=jnp.float32)

    mod = AvgPoolCmplx(kernel_size)
    y = jax.block_until_ready(mod(x))

    # Pure-JAX reference: non-overlapping 2x2 average pooling per component.
    kh, kw = _pair(kernel_size)
    ref = x.reshape(2, B, C, H // kh, kh, W // kw, kw).mean(axis=(4, 6))

    assert y.shape == (2, B, C, H // kh, W // kw)
    assert jnp.allclose(y, ref, atol=1e-5, rtol=1e-5)
    print("KERNEL_OK")
</pallas_src>

<mosaic_0001>
module attributes {stable_mosaic.version = 11 : i64} {
  func.func @_avg_pool_kernel(%arg0: i32, %arg1: memref<1x256x16xf32, #tpu.memory_space<vmem>>, %arg2: memref<16x8xf32, #tpu.memory_space<vmem>>, %arg3: memref<1x128x8xf32, #tpu.memory_space<vmem>>) attributes {dimension_semantics = [#tpu.dimension_semantics<parallel>], iteration_bounds = array<i64: 1>, scalar_prefetch = 0 : i64, scratch_operands = 0 : i64, tpu.core_type = #tpu.core_type<tc>, window_params = [{transform_indices = @transform_0, window_bounds = array<i64: 1, 256, 16>}, {pipeline_mode = #tpu.pipeline_mode<synchronous>, transform_indices = @transform_1, window_bounds = array<i64: 16, 8>}, {transform_indices = @transform_2, window_bounds = array<i64: 1, 128, 8>}]} {
    %c0 = arith.constant 0 : index
    %c0_0 = arith.constant 0 : index
    %c0_1 = arith.constant 0 : index
    %0 = tpu.strided_load %arg1[%c0, %c0_0, %c0_1] {strides = array<i32: 1, 2, 1>} : memref<1x256x16xf32, #tpu.memory_space<vmem>>, vector<1x128x16xf32>
    %1 = vector.shape_cast %0 : vector<1x128x16xf32> to vector<128x16xf32>
    %c0_2 = arith.constant 0 : index
    %c1 = arith.constant 1 : index
    %c0_3 = arith.constant 0 : index
    %2 = tpu.strided_load %arg1[%c0_2, %c1, %c0_3] {strides = array<i32: 1, 2, 1>} : memref<1x256x16xf32, #tpu.memory_space<vmem>>, vector<1x128x16xf32>
    %3 = vector.shape_cast %2 : vector<1x128x16xf32> to vector<128x16xf32>
    %4 = arith.addf %1, %3 : vector<128x16xf32>
    %c0_4 = arith.constant 0 : index
    %c0_5 = arith.constant 0 : index
    %5 = vector.load %arg2[%c0_4, %c0_5] : memref<16x8xf32, #tpu.memory_space<vmem>>, vector<16x8xf32>
    %cst = arith.constant dense<0.000000e+00> : vector<128x8xf32>
    %6 = tpu.matmul %4, %5, %cst {dimension_numbers = #tpu.dot_dimension_numbers<[1], [0], [0], [1], [0, 0, 1, 1], [], []>} : vector<128x16xf32>, vector<16x8xf32>, vector<128x8xf32> -> vector<128x8xf32>
    %c0_6 = arith.constant 0 : index
    %c0_7 = arith.constant 0 : index
    %c0_8 = arith.constant 0 : index
    %7 = vector.load %arg3[%c0_6, %c0_7, %c0_8] : memref<1x128x8xf32, #tpu.memory_space<vmem>>, vector<1x128x8xf32>
    %8 = vector.shape_cast %7 : vector<1x128x8xf32> to vector<128x8xf32>
    %9 = vector.shape_cast %6 : vector<128x8xf32> to vector<1x128x8xf32>
    tpu.vector_store %arg3[%c0_6, %c0_7, %c0_8], %9 {strides = array<i32>} : memref<1x128x8xf32, #tpu.memory_space<vmem>>, vector<1x128x8xf32>,
    return
  }
  func.func @transform_0(%arg0: i32) -> (i32, i32, i32) {
    %c0_i32 = arith.constant 0 : i32
    %c0_i32_0 = arith.constant 0 : i32
    %c0_i32_1 = arith.constant 0 : i32
    return %arg0, %c0_i32, %c0_i32_0 : i32, i32, i32
  }
  func.func @transform_1(%arg0: i32) -> (i32, i32) {
    %c0_i32 = arith.constant 0 : i32
    %c0_i32_0 = arith.constant 0 : i32
    %c0_i32_1 = arith.constant 0 : i32
    return %c0_i32, %c0_i32_0 : i32, i32
  }
  func.func @transform_2(%arg0: i32) -> (i32, i32, i32) {
    %c0_i32 = arith.constant 0 : i32
    %c0_i32_0 = arith.constant 0 : i32
    %c0_i32_1 = arith.constant 0 : i32
    return %arg0, %c0_i32, %c0_i32_0 : i32, i32, i32
  }
}

</mosaic_0001>

<llo_original>
// kernel: tpu_custom_call.1
$region0: #{tpu_custom_call.1}
  #allocation0 [shape = 'u32[]', space=smem, size = 0x4, offset = 0x4, fixed_abs, tag = 'smem constant byte address 0x4 - core index']
  #allocation1 [shape = 'u32[72,128]{1,0:T(1,128)}', space=vmem, size = 0x9000, scoped, tag = 'internal scratch']
  %s0 = inlined_call_operand.vmem [shape: f32[1,256,16], index: 0, kind: input, shape index: {}]
  %s1 = inlined_call_operand.vmem [shape: f32[16,8], index: 1, kind: input, shape index: {}]
  %s2 = inlined_call_operand.vmem [shape: f32[1,128,8], index: 2, kind: output, shape index: {}]
  %s3 = sld [smem:[#allocation0]]
  $region18: #{tpu_custom_call.1} parent=0
    _
  %s5 = ssub.s32 1, %s3
  %s6 = scalar_select 0, %s5, %s3
  // Predicated region
  $region2: #{tpu_custom_call.1} parent=0 // pred_check
    _
  $region3: #{tpu_custom_call.1} parent=0 // pred_check_branch
    %8 = sbr.rel (0) target = $region5
  $region4: #{tpu_custom_call.1} parent=0 // pred_region
    _
  $region5: #{tpu_custom_call.1} parent=0 // pred_fallthru
    _
  // Predicated region
  $region6: #{tpu_custom_call.1} parent=0 // pred_check
    _
  $region7: #{tpu_custom_call.1} parent=0 // pred_check_branch
    %10 = sbr.rel (0) target = $region9
  $region8: #{tpu_custom_call.1} parent=0 // pred_region
    _
  $region9: #{tpu_custom_call.1} parent=0 // pred_fallthru
    _
  %v11 = vld [vmem:[%s0] ss:$2 sm:$0xff]
  %s12 = scalar_lea.vmem %s0, 16
  %v13 = vld [vmem:[%s12] ss:$2 sm:$0xff]
  %s14 = scalar_lea.vmem %s0, 32
  %v15 = vld [vmem:[%s14] ss:$2 sm:$0xff]
  %s16 = scalar_lea.vmem %s0, 48
  %v17 = vld [vmem:[%s16] ss:$2 sm:$0xff]
  %s18 = scalar_lea.vmem %s0, 64
  %v19 = vld [vmem:[%s18] ss:$2 sm:$0xff]
  %s20 = scalar_lea.vmem %s0, 80
  %v21 = vld [vmem:[%s20] ss:$2 sm:$0xff]
  %s22 = scalar_lea.vmem %s0, 96
  %v23 = vld [vmem:[%s22] ss:$2 sm:$0xff]
  %s24 = scalar_lea.vmem %s0, 112
  %v25 = vld [vmem:[%s24] ss:$2 sm:$0xff]
  %s26 = scalar_lea.vmem %s0, 128
  %v27 = vld [vmem:[%s26] ss:$2 sm:$0xff]
  %s28 = scalar_lea.vmem %s0, 144
  %v29 = vld [vmem:[%s28] ss:$2 sm:$0xff]
  %s30 = scalar_lea.vmem %s0, 160
  %v31 = vld [vmem:[%s30] ss:$2 sm:$0xff]
  %s32 = scalar_lea.vmem %s0, 176
  %v33 = vld [vmem:[%s32] ss:$2 sm:$0xff]
  %s34 = scalar_lea.vmem %s0, 192
  %v35 = vld [vmem:[%s34] ss:$2 sm:$0xff]
  %s36 = scalar_lea.vmem %s0, 208
  %v37 = vld [vmem:[%s36] ss:$2 sm:$0xff]
  %s38 = scalar_lea.vmem %s0, 224
  %v39 = vld [vmem:[%s38] ss:$2 sm:$0xff]
  %s40 = scalar_lea.vmem %s0, 240
  %v41 = vld [vmem:[%s40] ss:$2 sm:$0xff]
  %s42 = scalar_lea.vmem %s0, 1
  %v43 = vld [vmem:[%s42] ss:$2 sm:$0xff]
  %s44 = scalar_lea.vmem %s0, 17
  %v45 = vld [vmem:[%s44] ss:$2 sm:$0xff]
  %s46 = scalar_lea.vmem %s0, 33
  %v47 = vld [vmem:[%s46] ss:$2 sm:$0xff]
  %s48 = scalar_lea.vmem %s0, 49
  %v49 = vld [vmem:[%s48] ss:$2 sm:$0xff]
  %s50 = scalar_lea.vmem %s0, 65
  %v51 = vld [vmem:[%s50] ss:$2 sm:$0xff]
  %s52 = scalar_lea.vmem %s0, 81
  %v53 = vld [vmem:[%s52] ss:$2 sm:$0xff]
  %s54 = scalar_lea.vmem %s0, 97
  %v55 = vld [vmem:[%s54] ss:$2 sm:$0xff]
  %s56 = scalar_lea.vmem %s0, 113
  %v57 = vld [vmem:[%s56] ss:$2 sm:$0xff]
  %s58 = scalar_lea.vmem %s0, 129
  %v59 = vld [vmem:[%s58] ss:$2 sm:$0xff]
  %s60 = scalar_lea.vmem %s0, 145
  %v61 = vld [vmem:[%s60] ss:$2 sm:$0xff]
  %s62 = scalar_lea.vmem %s0, 161
  %v63 = vld [vmem:[%s62] ss:$2 sm:$0xff]
  %s64 = scalar_lea.vmem %s0, 177
  %v65 = vld [vmem:[%s64] ss:$2 sm:$0xff]
  %s66 = scalar_lea.vmem %s0, 193
  %v67 = vld [vmem:[%s66] ss:$2 sm:$0xff]
  %s68 = scalar_lea.vmem %s0, 209
  %v69 = vld [vmem:[%s68] ss:$2 sm:$0xff]
  %s70 = scalar_lea.vmem %s0, 225
  %v71 = vld [vmem:[%s70] ss:$2 sm:$0xff]
  %s72 = scalar_lea.vmem %s0, 241
  %v73 = vld [vmem:[%s72] ss:$2 sm:$0xff]
  %v74 = vadd.f32 %v11, %v43
  %v75 = vadd.f32 %v13, %v45
  %v76 = vadd.f32 %v15, %v47
  %v77 = vadd.f32 %v17, %v49
  %v78 = vadd.f32 %v19, %v51
  %v79 = vadd.f32 %v21, %v53
  %v80 = vadd.f32 %v23, %v55
  %v81 = vadd.f32 %v25, %v57
  %v82 = vadd.f32 %v27, %v59
  %v83 = vadd.f32 %v29, %v61
  %v84 = vadd.f32 %v31, %v63
  %v85 = vadd.f32 %v33, %v65
  %v86 = vadd.f32 %v35, %v67
  %v87 = vadd.f32 %v37, %v69
  %v88 = vadd.f32 %v39, %v71
  %v89 = vadd.f32 %v41, %v73
  %v90 = vld [vmem:[%s1] sm:$0xff]
  %v91 = vld [vmem:[%s1 + $0x8] sm:$0xff]
  %vm92 = vcmask 130048
  %v94 = vsel %vm92, %v74, 0
  %v97 = vsel %vm92, %v75, 0
  %v100 = vsel %vm92, %v76, 0
  %v103 = vsel %vm92, %v77, 0
  %v106 = vsel %vm92, %v78, 0
  %v109 = vsel %vm92, %v79, 0
  %v112 = vsel %vm92, %v80, 0
  %v115 = vsel %vm92, %v81, 0
  %v118 = vsel %vm92, %v82, 0
  %v121 = vsel %vm92, %v83, 0
  %v124 = vsel %vm92, %v84, 0
  %v127 = vsel %vm92, %v85, 0
  %v130 = vsel %vm92, %v86, 0
  %v133 = vsel %vm92, %v87, 0
  %v136 = vsel %vm92, %v88, 0
  %v139 = vsel %vm92, %v89, 0
  %141 = vmatpush.msra.mxu0 0.0
  %142 = vmatpush.msra.mxu0 0.0
  %143 = vmatpush.msra.mxu0 0.0
  %144 = vmatpush.msra.mxu0 0.0
  %145 = vmatpush.msra.mxu0 0.0
  %146 = vmatpush.msra.mxu0 0.0
  %147 = vmatpush.msra.mxu0 0.0
  %148 = vmatpush.msra.mxu0 0.0
  %149 = vmatpush.msra.mxu0 0.0
  %150 = vmatpush.msra.mxu0 0.0
  %151 = vmatpush.msra.mxu0 0.0
  %152 = vmatpush.msra.mxu0 0.0
  %153 = vmatpush.msra.mxu0 0.0
  %154 = vmatpush.msra.mxu0 0.0
  %155 = vmatpush.msra.mxu0 %v91
  %156 = vmatpush.msra.mxu0 %v90
  %157 = vmatmul.f32.gmra.mxu0 %v94
  %v158 = vpop.f32.mrf.mxu0
  %v159 = vadd.f32 0.0, %v158
  %160 = vmatmul.f32.gmra.mxu0 %v97
  %v161 = vpop.f32.mrf.mxu0
  %v162 = vadd.f32 0.0, %v161
  %163 = vmatmul.f32.gmra.mxu0 %v100
  %v164 = vpop.f32.mrf.mxu0
  %v165 = vadd.f32 0.0, %v164
  %166 = vmatmul.f32.gmra.mxu0 %v103
  %v167 = vpop.f32.mrf.mxu0
  %v168 = vadd.f32 0.0, %v167
  %169 = vmatmul.f32.gmra.mxu0 %v106
  %v170 = vpop.f32.mrf.mxu0
  %v171 = vadd.f32 0.0, %v170
  %172 = vmatmul.f32.gmra.mxu0 %v109
  %v173 = vpop.f32.mrf.mxu0
  %v174 = vadd.f32 0.0, %v173
  %175 = vmatmul.f32.gmra.mxu0 %v112
  %v176 = vpop.f32.mrf.mxu0
  %v177 = vadd.f32 0.0, %v176
  %178 = vmatmul.f32.gmra.mxu0 %v115
  %v179 = vpop.f32.mrf.mxu0
  %v180 = vadd.f32 0.0, %v179
  %181 = vmatmul.f32.gmra.mxu0 %v118
  %v182 = vpop.f32.mrf.mxu0
  %v183 = vadd.f32 0.0, %v182
  %184 = vmatmul.f32.gmra.mxu0 %v121
  %v185 = vpop.f32.mrf.mxu0
  %v186 = vadd.f32 0.0, %v185
  %187 = vmatmul.f32.gmra.mxu0 %v124
  %v188 = vpop.f32.mrf.mxu0
  %v189 = vadd.f32 0.0, %v188
  %190 = vmatmul.f32.gmra.mxu0 %v127
  %v191 = vpop.f32.mrf.mxu0
  %v192 = vadd.f32 0.0, %v191
  %193 = vmatmul.f32.gmra.mxu0 %v130
  %v194 = vpop.f32.mrf.mxu0
  %v195 = vadd.f32 0.0, %v194
  %196 = vmatmul.f32.gmra.mxu0 %v133
  %v197 = vpop.f32.mrf.mxu0
  %v198 = vadd.f32 0.0, %v197
  %199 = vmatmul.f32.gmra.mxu0 %v136
  %v200 = vpop.f32.mrf.mxu0
  %v201 = vadd.f32 0.0, %v200
  %202 = vmatmul.f32.gmra.mxu0 %v139
  %v203 = vpop.f32.mrf.mxu0
  %v204 = vadd.f32 0.0, %v203
  %205 = vdwg.mxu0
  %vm206 = vcmask 64512
  %207 = vst.msk [vmem:[%s2] sm:$0xff] %vm206, %v159
  %208 = vst.msk [vmem:[%s2 + $0x8] sm:$0xff] %vm206, %v162
  %209 = vst.msk [vmem:[%s2 + $0x10] sm:$0xff] %vm206, %v165
  %210 = vst.msk [vmem:[%s2 + $0x18] sm:$0xff] %vm206, %v168
  %211 = vst.msk [vmem:[%s2 + $0x20] sm:$0xff] %vm206, %v171
  %212 = vst.msk [vmem:[%s2 + $0x28] sm:$0xff] %vm206, %v174
  %213 = vst.msk [vmem:[%s2 + $0x30] sm:$0xff] %vm206, %v177
  %214 = vst.msk [vmem:[%s2 + $0x38] sm:$0xff] %vm206, %v180
  %215 = vst.msk [vmem:[%s2 + $0x40] sm:$0xff] %vm206, %v183
  %216 = vst.msk [vmem:[%s2 + $0x48] sm:$0xff] %vm206, %v186
  %217 = vst.msk [vmem:[%s2 + $0x50] sm:$0xff] %vm206, %v189
  %218 = vst.msk [vmem:[%s2 + $0x58] sm:$0xff] %vm206, %v192
  %219 = vst.msk [vmem:[%s2 + $0x60] sm:$0xff] %vm206, %v195
  %220 = vst.msk [vmem:[%s2 + $0x68] sm:$0xff] %vm206, %v198
  %221 = vst.msk [vmem:[%s2 + $0x70] sm:$0xff] %vm206, %v201
  %222 = vst.msk [vmem:[%s2 + $0x78] sm:$0xff] %vm206, %v204
  // Predicated region
  $region10: #{tpu_custom_call.1} parent=0 // pred_check
    _
  $region11: #{tpu_custom_call.1} parent=0 // pred_check_branch
    %224 = sbr.rel (0) target = $region13
  $region12: #{tpu_custom_call.1} parent=0 // pred_region
    _
  $region13: #{tpu_custom_call.1} parent=0 // pred_fallthru
    _
  // Predicated region
  $region14: #{tpu_custom_call.1} parent=0 // pred_check
    _
  $region15: #{tpu_custom_call.1} parent=0 // pred_check_branch
    %226 = sbr.rel (0) target = $region17
  $region16: #{tpu_custom_call.1} parent=0 // pred_region
    _
  $region17: #{tpu_custom_call.1} parent=0 // pred_fallthru
    _

</llo_original>
